<compile_context>
chip_gen: v7x
topology: tpu7x:2x2x1
jax: 0.10.0
libtpu: 0.0.40
codegen_flags: <defaults>
</compile_context>

<pallas_src>
import functools
import math

import jax
import jax.numpy as jnp
from jax.experimental import pallas as pl
from jax.experimental.pallas import tpu as pltpu

_LANES = 128
_TARGET_BLOCK_BYTES = 2 * 1024 * 1024   # ~2 MiB per input block (HBM-roofline sweet spot)
_MIN_PIPELINE_STEPS = 4                 # keep >= this many grid steps on non-tiny inputs
_VMEM_LIMIT_BYTES = 32 * 1024 * 1024    # explicit scoped-VMEM request (>= default on all gens)


def _round_up(x, m):
    return ((x + m - 1) // m) * m


def _num_tensorcores():
    # Megacore split only pays on chips with 2 TensorCores per JAX device
    # (v4 / v5p / v7x).  v5e / v6e (and per-core v2/v3 devices) expose 1 TC.
    try:
        kind = jax.devices()[0].device_kind.lower()
    except Exception:
        return 2
    single = ("lite", "v2", "v3", "v5e", "v6e", "v6")
    if any(s in kind for s in single):
        return 1
    return 2


def _pick_cores(total_steps):
    nc = _num_tensorcores()
    if nc <= 1 or total_steps < 2 * nc:
        return 1
    if total_steps % nc != 0 and total_steps < 8 * nc:
        # An uneven split forces a duplicated (skipped) block; only accept that
        # waste when each core still gets plenty of work.
        return 1
    return nc


def _huber_unscaled(yt, yp, threshold):
    # huber(e) = 0.5 * g(e); the 0.5 is applied once on the final scalar.
    err = yp - yt
    abs_err = jnp.abs(err)
    thr = jnp.float32(threshold)
    return jnp.where(abs_err < thr, err * err,
                     jnp.float32(2.0 * threshold) * abs_err
                     - jnp.float32(threshold * threshold))


# --------------------------------------------------------------------------
# Unweighted path: mean of huber loss over finite elements (2-D streaming view)
# --------------------------------------------------------------------------
def _huber_mean_kernel(yt_ref, yp_ref, sum_ref, cnt_ref, loss_acc, cnt_acc, *,
                       threshold, rows_valid, block_rows, steps_per_core,
                       last_step, need_mask, dup_possible, tree):
    p = pl.program_id(0)                 # per-core ("parallel") axis
    s = pl.program_id(1)                 # streaming ("arbitrary") axis
    l = p * steps_per_core + s           # unclamped logical block index

    @pl.when(s == 0)
    def _init():
        loss_acc[...] = jnp.zeros_like(loss_acc)
        cnt_acc[...] = jnp.zeros_like(cnt_acc)

    def _accum(apply_mask):
        yt = yt_ref[...].astype(jnp.float32)      # (block_rows, cols)
        yp = yp_ref[...].astype(jnp.float32)
        valid = jnp.isfinite(yt) & jnp.isfinite(yp)
        if apply_mask:
            # Only rows below the true extent are real data (partial edge block).
            row_limit = rows_valid - l * block_rows
            row = jax.lax.broadcasted_iota(jnp.int32, yt.shape, 0)
            valid = valid & (row < row_limit)
        g = _huber_unscaled(yt, yp, threshold)
        zero = jnp.float32(0.0)
        one = jnp.float32(1.0)
        loss_c = jnp.where(valid, g, zero)        # select (not mul): no NaN/Inf leakage
        cnt_c = jnp.where(valid, one, zero)
        if tree:
            # VPU-only partial reduction: (block_rows, cols) -> (8, cols)
            grp = block_rows // 8
            cols = loss_c.shape[-1]
            loss_acc[...] += jnp.sum(loss_c.reshape(grp, 8, cols), axis=0)
            cnt_acc[...] += jnp.sum(cnt_c.reshape(grp, 8, cols), axis=0)
        else:
            loss_acc[...] += loss_c
            cnt_acc[...] += cnt_c

    if need_mask:
        # Interior blocks skip the row mask; the (possibly partial) last block
        # applies it; duplicated (clamped) blocks hit neither branch.
        @pl.when(l < last_step)
        def _():
            _accum(False)

        @pl.when(l == last_step)
        def _():
            _accum(True)
    elif dup_possible:
        @pl.when(l <= last_step)
        def _():
            _accum(False)
    else:
        _accum(False)

    @pl.when(s == pl.num_programs(1) - 1)
    def _flush():
        # One cross-sublane reduce per core; lane-dense (1, 1, cols) outputs.
        sum_ref[...] = jnp.sum(loss_acc[...], axis=0, keepdims=True)[None]
        cnt_ref[...] = jnp.sum(cnt_acc[...], axis=0, keepdims=True)[None]


def _best_2d_view(shape, n):
    """Zero-copy 2-D view (rows, cols) of a contiguous array for the mean path."""
    if n % _LANES == 0:
        return n // _LANES, _LANES                 # flat, perfectly lane-dense
    if len(shape) < 2:
        return 1, max(n, 1)
    # Ragged total size: pick the suffix-product split with the best lane
    # efficiency (ties -> more rows, so row-tiling / pipelining still works).
    best_key, best = None, None
    for k in range(1, len(shape)):
        q = int(math.prod(shape[k:]))
        r = n // q
        eff = q / float(_round_up(q, _LANES))
        fits = q * 4 <= _TARGET_BLOCK_BYTES
        key = (fits, eff, r)
        if best_key is None or key > best_key:
            best_key, best = key, (r, q)
    return best


def _huber_mean(y_true, y_pred, threshold):
    n = int(y_pred.size)
    if n == 0:
        return jnp.float32(jnp.nan)                # torch: mean of empty -> NaN

    R, Q = _best_2d_view(y_pred.shape, n)
    yt2 = y_true.reshape(R, Q)                     # free: contiguous, covers all elems
    yp2 = y_pred.reshape(R, Q)

    bytes_per_row = Q * 4
    max_rows = max(8, (_TARGET_BLOCK_BYTES // bytes_per_row) // 8 * 8)
    if R <= 8:
        block_rows = R                             # full extent (legal block dim)
    else:
        block_rows = min(max_rows,
                         max(8, _round_up(pl.cdiv(R, _MIN_PIPELINE_STEPS), 8)))

    total_steps = pl.cdiv(R, block_rows)
    ncores = _pick_cores(total_steps)
    steps_per_core = pl.cdiv(total_steps, ncores)
    last_step = total_steps - 1
    need_mask = (R % block_rows) != 0              # partial edge block overruns R
    dup_possible = ncores * steps_per_core != total_steps
    tree = (block_rows % 8 == 0) and (block_rows >= 8)
    acc_rows = 8 if tree else block_rows

    def y_map(p, s):
        # Clamp so duplicated steps stay in-bounds; they are skipped in-kernel.
        return (jnp.minimum(p * steps_per_core + s, last_step), 0)

    kernel = functools.partial(
        _huber_mean_kernel, threshold=float(threshold), rows_valid=R,
        block_rows=block_rows, steps_per_core=steps_per_core,
        last_step=last_step, need_mask=need_mask, dup_possible=dup_possible,
        tree=tree)

    in_bytes = 2 * n * y_pred.dtype.itemsize
    cost = pl.CostEstimate(flops=20 * n, transcendentals=0, bytes_accessed=in_bytes)

    sum_out, cnt_out = pl.pallas_call(
        kernel,
        out_shape=(jax.ShapeDtypeStruct((ncores, 1, Q), jnp.float32),
                   jax.ShapeDtypeStruct((ncores, 1, Q), jnp.float32)),
        grid_spec=pltpu.PrefetchScalarGridSpec(
            num_scalar_prefetch=0,
            grid=(ncores, steps_per_core),
            in_specs=[pl.BlockSpec((block_rows, Q), y_map),
                      pl.BlockSpec((block_rows, Q), y_map)],
            out_specs=(pl.BlockSpec((1, 1, Q), lambda p, s: (p, 0, 0)),
                       pl.BlockSpec((1, 1, Q), lambda p, s: (p, 0, 0))),
            scratch_shapes=[pltpu.VMEM((acc_rows, Q), jnp.float32),
                            pltpu.VMEM((acc_rows, Q), jnp.float32)]),
        compiler_params=pltpu.CompilerParams(
            dimension_semantics=("parallel", "arbitrary"),
            vmem_limit_bytes=_VMEM_LIMIT_BYTES),
        cost_estimate=cost,
    )(yt2, yp2)

    # Intentionally NaN when no element is finite (matches torch .mean()).
    return jnp.float32(0.5) * jnp.sum(sum_out) / jnp.sum(cnt_out)


# --------------------------------------------------------------------------
# Weighted path: sum(loss * weight-broadcast-over-channels) over finite elems
# --------------------------------------------------------------------------
def _huber_weighted_kernel(yt_ref, yp_ref, w_ref, out_ref, acc_ref, *,
                           threshold, B, M, C, tile_b, tile_m, n_mt,
                           steps_per_core, last_step, need_b_mask, need_m_mask,
                           c_tree, dup_possible):
    p = pl.program_id(0)
    s = pl.program_id(1)
    l = p * steps_per_core + s

    @pl.when(s == 0)
    def _init():
        acc_ref[...] = jnp.zeros_like(acc_ref)

    def _accum():
        yt = yt_ref[...].astype(jnp.float32)      # (tile_b, C, tile_m)
        yp = yp_ref[...].astype(jnp.float32)
        w = w_ref[...].astype(jnp.float32)        # (tile_b, 1, tile_m)
        valid = jnp.isfinite(yt) & jnp.isfinite(yp)
        if need_m_mask:
            col_limit = M - (l % n_mt) * tile_m
            col = jax.lax.broadcasted_iota(jnp.int32, yt.shape, 2)
            valid = valid & (col < col_limit)
        if need_b_mask:
            row_limit = B - (l // n_mt) * tile_b
            row = jax.lax.broadcasted_iota(jnp.int32, yt.shape, 0)
            valid = valid & (row < row_limit)
        g = _huber_unscaled(yt, yp, threshold)
        # select after the multiply so NaN/Inf in overrun regions never leak.
        contrib = jnp.where(valid, g * w, jnp.float32(0.0))   # w broadcasts over C
        t = jnp.sum(contrib, axis=0)                           # (C, tile_m): VPU adds
        if c_tree:
            t = jnp.sum(t.reshape(C // 8, 8, tile_m), axis=0)  # (8, tile_m)
        acc_ref[...] += t

    if dup_possible:
        @pl.when(l <= last_step)
        def _():
            _accum()
    else:
        _accum()

    @pl.when(s == pl.num_programs(1) - 1)
    def _flush():
        out_ref[...] = jnp.sum(acc_ref[...], axis=0, keepdims=True)[None]


def _huber_weighted_sum(y_true, y_pred, sample_weight, threshold):
    if int(y_pred.size) == 0:
        return jnp.float32(0.0)                    # torch: sum of empty -> 0

    B = int(y_pred.shape[0])
    C = int(y_pred.shape[1])
    M = int(math.prod(y_pred.shape[2:])) if y_pred.ndim > 2 else 1

    yt3 = y_true.reshape(B, C, M)                  # free (contiguous) reshapes
    yp3 = y_pred.reshape(B, C, M)
    sw3 = sample_weight.reshape(B, 1, M)           # broadcast over C happens in-kernel

    # --- m tiling: multiple of 128; ragged M handled by a partial edge block + mask
    if M >= _LANES:
        cap = max(_LANES, (_TARGET_BLOCK_BYTES // (C * 4)) // _LANES * _LANES)
        tile_m = min((M // _LANES) * _LANES, cap)
        if M >= 4 * _LANES:
            # keep a few grid steps alive so DMA overlaps compute
            tile_m = min(tile_m,
                         max(_LANES, _round_up(pl.cdiv(M, _MIN_PIPELINE_STEPS), _LANES)))
    else:
        tile_m = M                                  # small ragged width: full extent
    # TODO(synk): if C alone is huge (C*tile_m*4 > budget) the block still exceeds the
    # byte budget; a C-tiled grid axis would be needed for that regime.
    n_mt = pl.cdiv(M, tile_m)
    need_m_mask = (M % tile_m) != 0

    # --- b tiling: bounds the block size for large batches ---------------------
    tile_b = max(1, min(B, _TARGET_BLOCK_BYTES // max(1, C * tile_m * 4)))
    n_bt = pl.cdiv(B, tile_b)
    need_b_mask = (B % tile_b) != 0

    total_steps = n_bt * n_mt
    ncores = _pick_cores(total_steps)
    steps_per_core = pl.cdiv(total_steps, ncores)
    last_step = total_steps - 1
    dup_possible = ncores * steps_per_core != total_steps

    c_tree = (C % 8 == 0) and (C > 8)
    acc_rows = 8 if c_tree else C

    def _lin(p, s):
        return jnp.minimum(p * steps_per_core + s, last_step)

    def y_map(p, s):
        l = _lin(p, s)
        return (l // n_mt, 0, l % n_mt)

    def w_map(p, s):
        l = _lin(p, s)
        return (l // n_mt, 0, l % n_mt)

    kernel = functools.partial(
        _huber_weighted_kernel, threshold=float(threshold), B=B, M=M, C=C,
        tile_b=tile_b, tile_m=tile_m, n_mt=n_mt, steps_per_core=steps_per_core,
        last_step=last_step, need_b_mask=need_b_mask, need_m_mask=need_m_mask,
        c_tree=c_tree, dup_possible=dup_possible)

    n = B * C * M
    in_bytes = 2 * n * y_pred.dtype.itemsize + B * M * sample_weight.dtype.itemsize
    cost = pl.CostEstimate(flops=22 * n, transcendentals=0, bytes_accessed=in_bytes)

    out = pl.pallas_call(
        kernel,
        out_shape=jax.ShapeDtypeStruct((ncores, 1, tile_m), jnp.float32),
        grid_spec=pltpu.PrefetchScalarGridSpec(
            num_scalar_prefetch=0,
            grid=(ncores, steps_per_core),
            in_specs=[pl.BlockSpec((tile_b, C, tile_m), y_map),
                      pl.BlockSpec((tile_b, C, tile_m), y_map),
                      pl.BlockSpec((tile_b, 1, tile_m), w_map)],
            out_specs=pl.BlockSpec((1, 1, tile_m), lambda p, s: (p, 0, 0)),
            scratch_shapes=[pltpu.VMEM((acc_rows, tile_m), jnp.float32)]),
        compiler_params=pltpu.CompilerParams(
            dimension_semantics=("parallel", "arbitrary"),
            vmem_limit_bytes=_VMEM_LIMIT_BYTES),
        cost_estimate=cost,
    )(yt3, yp3, sw3)

    return jnp.float32(0.5) * jnp.sum(out)


# --------------------------------------------------------------------------
# Public API (mirrors HuberCustomLoss.forward)
# --------------------------------------------------------------------------
def huber_custom_loss(y_true, y_pred, sample_weight=None, threshold=1.0):
    if sample_weight is not None:
        return _huber_weighted_sum(y_true, y_pred, sample_weight, threshold)
    return _huber_mean(y_true, y_pred, threshold)


def _reference(y_true, y_pred, sample_weight=None, threshold=1.0):
    """Pure-JAX reference mirroring the PyTorch forward."""
    y_true = y_true.astype(jnp.float32)
    y_pred = y_pred.astype(jnp.float32)
    finite = jnp.isfinite(y_pred) & jnp.isfinite(y_true)
    err = y_pred - y_true
    abs_err = jnp.abs(err)
    loss = jnp.where(abs_err < threshold, 0.5 * err * err,
                     threshold * abs_err - 0.5 * threshold * threshold)
    if sample_weight is not None:
        w = jnp.broadcast_to(jnp.expand_dims(sample_weight, 1), y_true.shape)
        return jnp.sum(jnp.where(finite, loss * w, 0.0))
    return jnp.sum(jnp.where(finite, loss, 0.0)) / jnp.sum(finite)


def _check(y_true, y_pred, sample_weight, threshold=1.0):
    out_mean = jax.block_until_ready(
        huber_custom_loss(y_true, y_pred, threshold=threshold))
    ref_mean = _reference(y_true, y_pred, threshold=threshold)
    assert jnp.allclose(out_mean, ref_mean, rtol=1e-4, atol=1e-5), (out_mean, ref_mean)

    out_wsum = jax.block_until_ready(
        huber_custom_loss(y_true, y_pred, sample_weight=sample_weight,
                          threshold=threshold))
    ref_wsum = _reference(y_true, y_pred, sample_weight=sample_weight,
                          threshold=threshold)
    assert jnp.allclose(out_wsum, ref_wsum, rtol=1e-4, atol=1e-5), (out_wsum, ref_wsum)


if __name__ == "__main__":
    key = jax.random.PRNGKey(0)

    # --- main test: (B, C, H, W) = (2, 4, 16, 16), weight (B, H, W) ----------
    k1, k2, k3 = jax.random.split(key, 3)
    B, C, H, W = 2, 4, 16, 16
    y_true = jax.random.normal(k1, (B, C, H, W), dtype=jnp.float32)
    y_pred = jax.random.normal(k2, (B, C, H, W), dtype=jnp.float32)
    y_pred = y_pred.at[0, 0, 0, 0].set(jnp.inf)     # exercise the finite mask
    y_true = y_true.at[1, 2, 3, 4].set(jnp.nan)
    sample_weight = jax.random.uniform(k3, (B, H, W), dtype=jnp.float32)
    _check(y_true, y_pred, sample_weight)

    # --- ragged test: total size and M not multiples of 128 (no-pad path) ----
    k4, k5, k6 = jax.random.split(jax.random.PRNGKey(1), 3)
    yt_r = jax.random.normal(k4, (2, 3, 10, 10), dtype=jnp.float32)
    yp_r = jax.random.normal(k5, (2, 3, 10, 10), dtype=jnp.float32)
    yp_r = yp_r.at[1, 1, 0, 0].set(-jnp.inf)
    sw_r = jax.random.uniform(k6, (2, 10, 10), dtype=jnp.float32)
    _check(yt_r, yp_r, sw_r)

    # --- ragged M >= 128: exercises the partial minor-dim block + col mask ---
    k10, k11, k12 = jax.random.split(jax.random.PRNGKey(3), 3)
    yt_m = jax.random.normal(k10, (2, 3, 20, 10), dtype=jnp.float32)
    yp_m = jax.random.normal(k11, (2, 3, 20, 10), dtype=jnp.float32)
    yp_m = yp_m.at[0, 2, 19, 9].set(jnp.nan)
    sw_m = jax.random.uniform(k12, (2, 20, 10), dtype=jnp.float32)
    _check(yt_m, yp_m, sw_m)

    # --- multi-block test: multi-step accumulation, partial row block mask ---
    k7, k8, k9 = jax.random.split(jax.random.PRNGKey(2), 3)
    yt_b = jax.random.normal(k7, (2, 4, 200, 240), dtype=jnp.float32)
    yp_b = jax.random.normal(k8, (2, 4, 200, 240), dtype=jnp.float32)
    yp_b = yp_b.at[0, 3, 100, 100].set(jnp.inf)
    yt_b = yt_b.at[1, 0, 5, 7].set(jnp.nan)
    sw_b = jax.random.uniform(k9, (2, 200, 240), dtype=jnp.float32)
    _check(yt_b, yp_b, sw_b)

    print("KERNEL_OK")
</pallas_src>

<mosaic_0001>
module attributes {stable_mosaic.version = 11 : i64} {
  func.func @_huber_mean_kernel(%arg0: i32, %arg1: i32, %arg2: memref<8x128xf32, #tpu.memory_space<vmem>>, %arg3: memref<8x128xf32, #tpu.memory_space<vmem>>, %arg4: memref<1x1x128xf32, #tpu.memory_space<vmem>>, %arg5: memref<1x1x128xf32, #tpu.memory_space<vmem>>, %arg6: memref<8x128xf32, #tpu.memory_space<vmem>>, %arg7: memref<8x128xf32, #tpu.memory_space<vmem>>) attributes {dimension_semantics = [#tpu.dimension_semantics<parallel>, #tpu.dimension_semantics<arbitrary>], iteration_bounds = array<i64: 1, 2>, scalar_prefetch = 0 : i64, scratch_operands = 2 : i64, tpu.core_type = #tpu.core_type<tc>, window_params = [{transform_indices = @transform_0, window_bounds = array<i64: 8, 128>}, {transform_indices = @transform_1, window_bounds = array<i64: 8, 128>}, {transform_indices = @transform_2, window_bounds = array<i64: 1, 1, 128>}, {transform_indices = @transform_3, window_bounds = array<i64: 1, 1, 128>}]} {
    %c0_i32 = arith.constant 0 : i32
    %0 = arith.cmpi eq, %arg1, %c0_i32 : i32
    %1 = arith.extui %0 : i1 to i32
    %c0_i32_0 = arith.constant 0 : i32
    %2 = arith.cmpi ne, %1, %c0_i32_0 : i32
    scf.if %2 {
      %cst_22 = arith.constant 0.000000e+00 : f32
      %38 = vector.broadcast %cst_22 : f32 to vector<8x128xf32>
      %c0_23 = arith.constant 0 : index
      %c0_24 = arith.constant 0 : index
      %39 = vector.load %arg6[%c0_23, %c0_24] : memref<8x128xf32, #tpu.memory_space<vmem>>, vector<8x128xf32>
      tpu.vector_store %arg6[%c0_23, %c0_24], %38 {strides = array<i32>} : memref<8x128xf32, #tpu.memory_space<vmem>>, vector<8x128xf32>,
      %cst_25 = arith.constant 0.000000e+00 : f32
      %40 = vector.broadcast %cst_25 : f32 to vector<8x128xf32>
      %c0_26 = arith.constant 0 : index
      %c0_27 = arith.constant 0 : index
      %41 = vector.load %arg7[%c0_26, %c0_27] : memref<8x128xf32, #tpu.memory_space<vmem>>, vector<8x128xf32>
      tpu.vector_store %arg7[%c0_26, %c0_27], %40 {strides = array<i32>} : memref<8x128xf32, #tpu.memory_space<vmem>>, vector<8x128xf32>,
    } else {
    }
    %c0 = arith.constant 0 : index
    %c0_1 = arith.constant 0 : index
    %3 = vector.load %arg2[%c0, %c0_1] : memref<8x128xf32, #tpu.memory_space<vmem>>, vector<8x128xf32>
    %c0_2 = arith.constant 0 : index
    %c0_3 = arith.constant 0 : index
    %4 = vector.load %arg3[%c0_2, %c0_3] : memref<8x128xf32, #tpu.memory_space<vmem>>, vector<8x128xf32>
    %5 = tpu.weird %3 : vector<8x128xf32> -> vector<8x128xi1>
    %cst = arith.constant dense<true> : vector<8x128xi1>
    %6 = arith.xori %5, %cst : vector<8x128xi1>
    %7 = tpu.weird %4 : vector<8x128xf32> -> vector<8x128xi1>
    %cst_4 = arith.constant dense<true> : vector<8x128xi1>
    %8 = arith.xori %7, %cst_4 : vector<8x128xi1>
    %9 = arith.andi %6, %8 : vector<8x128xi1>
    %10 = arith.subf %4, %3 : vector<8x128xf32>
    %11 = math.absf %10 : vector<8x128xf32>
    %cst_5 = arith.constant 1.000000e+00 : f32
    %12 = vector.broadcast %cst_5 : f32 to vector<8x128xf32>
    %13 = arith.cmpf olt, %11, %12 : vector<8x128xf32>
    %14 = arith.mulf %10, %10 : vector<8x128xf32>
    %cst_6 = arith.constant 2.000000e+00 : f32
    %15 = vector.broadcast %cst_6 : f32 to vector<8x128xf32>
    %16 = arith.mulf %15, %11 : vector<8x128xf32>
    %cst_7 = arith.constant 1.000000e+00 : f32
    %17 = vector.broadcast %cst_7 : f32 to vector<8x128xf32>
    %18 = arith.subf %16, %17 : vector<8x128xf32>
    %19 = arith.select %13, %14, %18 : vector<8x128xi1>, vector<8x128xf32>
    %cst_8 = arith.constant 0.000000e+00 : f32
    %20 = vector.broadcast %cst_8 : f32 to vector<8x128xf32>
    %21 = arith.select %9, %19, %20 : vector<8x128xi1>, vector<8x128xf32>
    %cst_9 = arith.constant 1.000000e+00 : f32
    %cst_10 = arith.constant 0.000000e+00 : f32
    %22 = vector.broadcast %cst_9 : f32 to vector<8x128xf32>
    %23 = vector.broadcast %cst_10 : f32 to vector<8x128xf32>
    %24 = arith.select %9, %22, %23 : vector<8x128xi1>, vector<8x128xf32>
    %c0_11 = arith.constant 0 : index
    %c0_12 = arith.constant 0 : index
    %25 = vector.load %arg6[%c0_11, %c0_12] : memref<8x128xf32, #tpu.memory_space<vmem>>, vector<8x128xf32>
    %26 = vector.shape_cast %21 : vector<8x128xf32> to vector<1x8x128xf32>
    %cst_13 = arith.constant dense<0.000000e+00> : vector<8x128xf32>
    %27 = vector.multi_reduction <add>, %26, %cst_13 [0] : vector<1x8x128xf32> to vector<8x128xf32>
    %28 = arith.addf %25, %27 : vector<8x128xf32>
    %c0_14 = arith.constant 0 : index
    %c0_15 = arith.constant 0 : index
    %29 = vector.load %arg6[%c0_14, %c0_15] : memref<8x128xf32, #tpu.memory_space<vmem>>, vector<8x128xf32>
    tpu.vector_store %arg6[%c0_14, %c0_15], %28 {strides = array<i32>} : memref<8x128xf32, #tpu.memory_space<vmem>>, vector<8x128xf32>,
    %c0_16 = arith.constant 0 : index
    %c0_17 = arith.constant 0 : index
    %30 = vector.load %arg7[%c0_16, %c0_17] : memref<8x128xf32, #tpu.memory_space<vmem>>, vector<8x128xf32>
    %31 = vector.shape_cast %24 : vector<8x128xf32> to vector<1x8x128xf32>
    %cst_18 = arith.constant dense<0.000000e+00> : vector<8x128xf32>
    %32 = vector.multi_reduction <add>, %31, %cst_18 [0] : vector<1x8x128xf32> to vector<8x128xf32>
    %33 = arith.addf %30, %32 : vector<8x128xf32>
    %c0_19 = arith.constant 0 : index
    %c0_20 = arith.constant 0 : index
    %34 = vector.load %arg7[%c0_19, %c0_20] : memref<8x128xf32, #tpu.memory_space<vmem>>, vector<8x128xf32>
    tpu.vector_store %arg7[%c0_19, %c0_20], %33 {strides = array<i32>} : memref<8x128xf32, #tpu.memory_space<vmem>>, vector<8x128xf32>,
    %c1_i32 = arith.constant 1 : i32
    %35 = arith.cmpi eq, %arg1, %c1_i32 : i32
    %36 = arith.extui %35 : i1 to i32
    %c0_i32_21 = arith.constant 0 : i32
    %37 = arith.cmpi ne, %36, %c0_i32_21 : i32
    scf.if %37 {
      %c0_22 = arith.constant 0 : index
      %c0_23 = arith.constant 0 : index
      %38 = vector.load %arg6[%c0_22, %c0_23] : memref<8x128xf32, #tpu.memory_space<vmem>>, vector<8x128xf32>
      %cst_24 = arith.constant dense<0.000000e+00> : vector<128xf32>
      %39 = vector.multi_reduction <add>, %38, %cst_24 [0] : vector<8x128xf32> to vector<128xf32>
      %40 = vector.shape_cast %39 : vector<128xf32> to vector<1x128xf32>
      %41 = vector.shape_cast %40 : vector<1x128xf32> to vector<1x1x128xf32>
      %c0_25 = arith.constant 0 : index
      %c0_26 = arith.constant 0 : index
      %c0_27 = arith.constant 0 : index
      %42 = vector.load %arg4[%c0_25, %c0_26, %c0_27] : memref<1x1x128xf32, #tpu.memory_space<vmem>>, vector<1x1x128xf32>
      tpu.vector_store %arg4[%c0_25, %c0_26, %c0_27], %41 {strides = array<i32>} : memref<1x1x128xf32, #tpu.memory_space<vmem>>, vector<1x1x128xf32>,
      %c0_28 = arith.constant 0 : index
      %c0_29 = arith.constant 0 : index
      %43 = vector.load %arg7[%c0_28, %c0_29] : memref<8x128xf32, #tpu.memory_space<vmem>>, vector<8x128xf32>
      %cst_30 = arith.constant dense<0.000000e+00> : vector<128xf32>
      %44 = vector.multi_reduction <add>, %43, %cst_30 [0] : vector<8x128xf32> to vector<128xf32>
      %45 = vector.shape_cast %44 : vector<128xf32> to vector<1x128xf32>
      %46 = vector.shape_cast %45 : vector<1x128xf32> to vector<1x1x128xf32>
      %c0_31 = arith.constant 0 : index
      %c0_32 = arith.constant 0 : index
      %c0_33 = arith.constant 0 : index
      %47 = vector.load %arg5[%c0_31, %c0_32, %c0_33] : memref<1x1x128xf32, #tpu.memory_space<vmem>>, vector<1x1x128xf32>
      tpu.vector_store %arg5[%c0_31, %c0_32, %c0_33], %46 {strides = array<i32>} : memref<1x1x128xf32, #tpu.memory_space<vmem>>, vector<1x1x128xf32>,
    } else {
    }
    return
  }
  func.func @transform_0(%arg0: i32, %arg1: i32) -> (i32, i32) {
    %c2_i32 = arith.constant 2 : i32
    %0 = arith.muli %arg0, %c2_i32 : i32
    %1 = arith.addi %0, %arg1 : i32
    %c1_i32 = arith.constant 1 : i32
    %2 = arith.minsi %1, %c1_i32 : i32
    %c0_i32 = arith.constant 0 : i32
    %c0_i32_0 = arith.constant 0 : i32
    return %2, %c0_i32 : i32, i32
  }
  func.func @transform_1(%arg0: i32, %arg1: i32) -> (i32, i32) {
    %c2_i32 = arith.constant 2 : i32
    %0 = arith.muli %arg0, %c2_i32 : i32
    %1 = arith.addi %0, %arg1 : i32
    %c1_i32 = arith.constant 1 : i32
    %2 = arith.minsi %1, %c1_i32 : i32
    %c0_i32 = arith.constant 0 : i32
    %c0_i32_0 = arith.constant 0 : i32
    return %2, %c0_i32 : i32, i32
  }
  func.func @transform_2(%arg0: i32, %arg1: i32) -> (i32, i32, i32) {
    %c0_i32 = arith.constant 0 : i32
    %c0_i32_0 = arith.constant 0 : i32
    %c0_i32_1 = arith.constant 0 : i32
    return %arg0, %c0_i32, %c0_i32_0 : i32, i32, i32
  }
  func.func @transform_3(%arg0: i32, %arg1: i32) -> (i32, i32, i32) {
    %c0_i32 = arith.constant 0 : i32
    %c0_i32_0 = arith.constant 0 : i32
    %c0_i32_1 = arith.constant 0 : i32
    return %arg0, %c0_i32, %c0_i32_0 : i32, i32, i32
  }
}

</mosaic_0001>

<llo_original>
// kernel: tpu_custom_call.1
$region0: #{tpu_custom_call.1}
  #allocation0 [shape = 'u32[]', space=smem, size = 0x4, offset = 0x4, fixed_abs, tag = 'smem constant byte address 0x4 - core index']
  #allocation1 [shape = 'u32[144,128]{1,0:T(1,128)}', space=vmem, size = 0x12000, scoped, tag = 'internal scratch']
  #allocation2 [shape = 'f32[8,128]{1,0:T(8,128)}', space=vmem, size = 0x1000, scoped, tag = 'scratch operand']
  #allocation3 [shape = 'f32[8,128]{1,0:T(8,128)}', space=vmem, size = 0x1000, scoped, tag = 'scratch operand']
  %s0 = inlined_call_operand.hbm [shape: f32[16,128], index: 0, kind: input, shape index: {}]
  %s1 = inlined_call_operand.hbm [shape: f32[16,128], index: 1, kind: input, shape index: {}]
  %s2 = inlined_call_operand.hbm [shape: f32[1,1,128], index: 2, kind: output, shape index: {0}]
  %s3 = inlined_call_operand.hbm [shape: f32[1,1,128], index: 3, kind: output, shape index: {1}]
  %4 = xla_tuple %s2, %s3
  %s5 = sld [smem:[#allocation0]]
  $region65: #{tpu_custom_call.1} parent=0
    _
  %s7 = ssub.s32 1, %s5
  %s8 = scalar_select 0, %s7, %s5
  $region1: #{tpu_custom_call.1} parent=0
    #allocation4 [shape = 'u8[8192]{0}', space=vmem, size = 0x2000, scoped, tag = 'input window, operand 0']
    #allocation5 [shape = 's32[2]{0}', space=sflag, size = 0x8, scoped, tag = 'scoped memory for tpu_custom_call.1']
    #allocation6 [shape = 's32[2]{0}', space=sflag, size = 0x8, scoped, tag = 'scoped memory for tpu_custom_call.1']
    #allocation7 [shape = 'u8[8192]{0}', space=vmem, size = 0x2000, scoped, tag = 'input window, operand 1']
    #allocation8 [shape = 's32[2]{0}', space=sflag, size = 0x8, scoped, tag = 'scoped memory for tpu_custom_call.1']
    #allocation9 [shape = 'u8[512]{0}', space=vmem, size = 0x400, scoped, tag = 'output window, operand 0, single buffered']
    #allocation10 [shape = 'u8[512]{0}', space=vmem, size = 0x400, scoped, tag = 'output window, operand 1, single buffered']
    #allocation11 [shape = 's32[1]{0}', space=sflag, size = 0x4, scoped, tag = 'scoped memory for tpu_custom_call.1']
    %9 = vsyncpa [#allocation5], 0
    %s10 = scalar_lea.sflag [#allocation5], 1
    %11 = vsyncpa %s10, 0
    %12 = vsyncpa [#allocation8], 0
    %s13 = scalar_lea.sflag [#allocation8], 1
    %14 = vsyncpa %s13, 0
    %15 = vsyncpa [#allocation6], 0
    %16 = vsyncpa [#allocation11], 0
    loop: start=0, step=1, limit=4
    $region2: #{tpu_custom_call.1} parent=1 // loop_pre_header
      _
    $region3: #{tpu_custom_call.1} parent=1 // loop_header
      %s18 = sphi 0, %s22
      %p19 = scmp.ge.s32.totalorder %s18, 4
      %s25 = sphi 0, %s37
      %s26 = sphi 0, %s33
      %s27 = sphi 0, %s25
      %s28 = sphi 0, %s26
      %s29 = sphi 0, %s27
      %s30 = sphi 0, %s28
      %s48 = sphi 0, %s50
      %s51 = sphi 0, %s48
      %s52 = sphi 0, %s51
      %s68 = sphi 0, %s52
      %s82 = sphi 0, %s84
      %s85 = sphi 0, %s82
      %s86 = sphi 0, %s85
      %s102 = sphi 0, %s86
      %s108 = sphi 0, %s110
      %s111 = sphi 0, %s108
      %s112 = sphi 0, %s111
      %s128 = sphi 0, %s112
      %s134 = sphi 0, %s136
      %s137 = sphi 0, %s134
      %s138 = sphi 0, %s137
      %s154 = sphi 0, %s138
    $region4: #{tpu_custom_call.1} parent=1 // loop_header_branch
      %21 = sbr.rel (%p19) target = $region8
    $region5: #{tpu_custom_call.1} parent=1 // loop_body
      %s23 = ssub.s32 %s18, 1
      %s24 = ssub.s32 %s18, 2
      %s31 = sadd.s32 1, %s26
      %p32 = scmp.ge.s32.totalorder %s31, 2
      %s33 = scalar_select %p32, 0, %s31
      %s34 = sadd.s32 1, %s25
      %s35 = scalar_select %p32, %s34, %s25
      %p36 = scmp.ge.s32.totalorder %s35, 1
      %s37 = scalar_select %p36, 0, %s35
      %s38 = smul.u32 %s25, 2
      %s39 = sadd.s32 %s38, %s26
      %p40 = scmp.lt.s32.totalorder %s39, 1
      %s41 = scalar_select %p40, %s39, 1
      %s42 = smul.u32 %s37, 2
      %s43 = sadd.s32 %s42, %s33
      %p44 = scmp.lt.s32.totalorder %s43, 1
      %s45 = scalar_select %p44, %s43, 1
      %s46 = ssub.s32 %s41, %s45
      %p47 = scmp.eq.s32.totalorder %s46, 0
      %s49 = sadd.s32 %s48, 1
      %s50 = scalar_select %p47, %s48, %s49
      %p53 = pneg %p47
      %p54 = scmp.eq.s32.totalorder %s18, 1
      %p55 = por %p53, %p54
      %p56 = scmp.ne.s32.totalorder %s48, %s51
      %p57 = scmp.eq.s32.totalorder %s18, 0
      %p58 = por %p56, %p57
      %p59 = scmp.ne.s32.totalorder %s48, %s51
      %p60 = scmp.eq.s32.totalorder %s23, 1
      %p61 = por %p59, %p60
      %p62 = scmp.ne.s32.totalorder %s51, %s52
      %p63 = scmp.eq.s32.totalorder %s23, 0
      %p64 = por %p62, %p63
      %p65 = scmp.ne.s32.totalorder %s51, %s52
      %p66 = scmp.eq.s32.totalorder %s24, 1
      %p67 = por %p65, %p66
      %p69 = scmp.ne.s32.totalorder %s52, %s68
      %p70 = scmp.eq.s32.totalorder %s24, 0
      %p71 = por %p69, %p70
      %s72 = smul.u32 %s25, 2
      %s73 = sadd.s32 %s72, %s26
      %p74 = scmp.lt.s32.totalorder %s73, 1
      %s75 = scalar_select %p74, %s73, 1
      %s76 = smul.u32 %s37, 2
      %s77 = sadd.s32 %s76, %s33
      %p78 = scmp.lt.s32.totalorder %s77, 1
      %s79 = scalar_select %p78, %s77, 1
      %s80 = ssub.s32 %s75, %s79
      %p81 = scmp.eq.s32.totalorder %s80, 0
      %s83 = sadd.s32 %s82, 1
      %s84 = scalar_select %p81, %s82, %s83
      %p87 = pneg %p81
      %p88 = scmp.eq.s32.totalorder %s18, 1
      %p89 = por %p87, %p88
      %p90 = scmp.ne.s32.totalorder %s82, %s85
      %p91 = scmp.eq.s32.totalorder %s18, 0
      %p92 = por %p90, %p91
      %p93 = scmp.ne.s32.totalorder %s82, %s85
      %p94 = scmp.eq.s32.totalorder %s23, 1
      %p95 = por %p93, %p94
      %p96 = scmp.ne.s32.totalorder %s85, %s86
      %p97 = scmp.eq.s32.totalorder %s23, 0
      %p98 = por %p96, %p97
      %p99 = scmp.ne.s32.totalorder %s85, %s86
      %p100 = scmp.eq.s32.totalorder %s24, 1
      %p101 = por %p99, %p100
      %p103 = scmp.ne.s32.totalorder %s86, %s102
      %p104 = scmp.eq.s32.totalorder %s24, 0
      %p105 = por %p103, %p104
      %s106 = ssub.s32 %s25, %s37
      %p107 = scmp.eq.s32.totalorder %s106, 0
      %s109 = sadd.s32 %s108, 1
      %s110 = scalar_select %p107, %s108, %s109
      %p113 = pneg %p107
      %p114 = scmp.eq.s32.totalorder %s18, 1
      %p115 = por %p113, %p114
      %p116 = scmp.ne.s32.totalorder %s108, %s111
      %p117 = scmp.eq.s32.totalorder %s18, 0
      %p118 = por %p116, %p117
      %p119 = scmp.ne.s32.totalorder %s108, %s111
      %p120 = scmp.eq.s32.totalorder %s23, 1
      %p121 = por %p119, %p120
      %p122 = scmp.ne.s32.totalorder %s111, %s112
      %p123 = scmp.eq.s32.totalorder %s23, 0
      %p124 = por %p122, %p123
      %p125 = scmp.ne.s32.totalorder %s111, %s112
      %p126 = scmp.eq.s32.totalorder %s24, 1
      %p127 = por %p125, %p126
      %p129 = scmp.ne.s32.totalorder %s112, %s128
      %p130 = scmp.eq.s32.totalorder %s24, 0
      %p131 = por %p129, %p130
      %s132 = ssub.s32 %s25, %s37
      %p133 = scmp.eq.s32.totalorder %s132, 0
      %s135 = sadd.s32 %s134, 1
      %s136 = scalar_select %p133, %s134, %s135
      %p139 = pneg %p133
      %p140 = scmp.eq.s32.totalorder %s18, 1
      %p141 = por %p139, %p140
      %p142 = scmp.ne.s32.totalorder %s134, %s137
      %p143 = scmp.eq.s32.totalorder %s18, 0
      %p144 = por %p142, %p143
      %p145 = scmp.ne.s32.totalorder %s134, %s137
      %p146 = scmp.eq.s32.totalorder %s23, 1
      %p147 = por %p145, %p146
      %p148 = scmp.ne.s32.totalorder %s137, %s138
      %p149 = scmp.eq.s32.totalorder %s23, 0
      %p150 = por %p148, %p149
      %p151 = scmp.ne.s32.totalorder %s137, %s138
      %p152 = scmp.eq.s32.totalorder %s24, 1
      %p153 = por %p151, %p152
      %p155 = scmp.ne.s32.totalorder %s138, %s154
      %p156 = scmp.eq.s32.totalorder %s24, 0
      %p157 = por %p155, %p156
      %p158 = scmp.le.s32.totalorder 1, %s18
      %p159 = scmp.lt.s32.totalorder %s18, 3
      %p160 = pnand %p158, %p159
      %p161 = pneg %p160
      // Predicated region
      $region9: #{tpu_custom_call.1} parent=5 // pred_check
        _
      $region10: #{tpu_custom_call.1} parent=5 // pred_check_branch
        %163 = sbr.rel (%p160) target = $region12
      $region11: #{tpu_custom_call.1} parent=5 // pred_region
        %s164 = ssub.s32 %s18, 1
      $region12: #{tpu_custom_call.1} parent=5 // pred_fallthru
        _
      %p165 = scmp.lt.s32.totalorder %s18, 2
      // Predicated region
      $region13: #{tpu_custom_call.1} parent=5 // pred_check
        %p166 = pneg %p165
      $region14: #{tpu_custom_call.1} parent=5 // pred_check_branch
        %168 = sbr.rel (%p166) target = $region16
      $region15: #{tpu_custom_call.1} parent=5 // pred_region
        // Predicated region
        $region17: #{tpu_custom_call.1} parent=15 // pred_check
          %p169 = pneg %p58
        $region18: #{tpu_custom_call.1} parent=15 // pred_check_branch
          %171 = sbr.rel (%p169) target = $region20
        $region19: #{tpu_custom_call.1} parent=15 // pred_region
          %s172 = sand.u32 %s48, 1
          %s173 = scalar_lea.sflag [#allocation5], %s172
          %s174 = sand.u32 %s48, 1
          %s175 = smul.addr %s174, 8
          %s176 = scalar_lea.vmem [#allocation4], %s175
          %s177 = smul.u32 %s25, 2
          %s178 = sadd.s32 %s177, %s26
          %p179 = scmp.lt.s32.totalorder %s178, 1
          %s180 = scalar_select %p179, %s178, 1
          %s182 = ssub.s32 128, 128
          %183 = vsyncadd %s173, %s182
          %s184 = smul.addr %s180, 128
          %s185 = scalar_lea.hbm %s0, %s184
          %s187 = sshll.u32 %s176, 4
          %s188 = int_to_ptr.vmem [resolvable:$true] %s187
          %190 = dma.hbm_to_vmem [thread:$0]  %s185, 128, %s188, %s173
        $region20: #{tpu_custom_call.1} parent=15 // pred_fallthru
          _
        // Predicated region
        $region21: #{tpu_custom_call.1} parent=15 // pred_check
          %p191 = pneg %p92
        $region22: #{tpu_custom_call.1} parent=15 // pred_check_branch
          %193 = sbr.rel (%p191) target = $region24
        $region23: #{tpu_custom_call.1} parent=15 // pred_region
          %s194 = sand.u32 %s82, 1
          %s195 = scalar_lea.sflag [#allocation8], %s194
          %s196 = sand.u32 %s82, 1
          %s197 = smul.addr %s196, 8
          %s198 = scalar_lea.vmem [#allocation7], %s197
          %s199 = smul.u32 %s25, 2
          %s200 = sadd.s32 %s199, %s26
          %p201 = scmp.lt.s32.totalorder %s200, 1
          %s202 = scalar_select %p201, %s200, 1
          %s204 = ssub.s32 128, 128
          %205 = vsyncadd %s195, %s204
          %s206 = smul.addr %s202, 128
          %s207 = scalar_lea.hbm %s1, %s206
          %s209 = sshll.u32 %s198, 4
          %s210 = int_to_ptr.vmem [resolvable:$true] %s209
          %212 = dma.hbm_to_vmem [thread:$0]  %s207, 128, %s210, %s195
        $region24: #{tpu_custom_call.1} parent=15 // pred_fallthru
          _
      $region16: #{tpu_custom_call.1} parent=5 // pred_fallthru
        _
      %p213 = scmp.le.s32.totalorder 1, %s18
      %p214 = scmp.lt.s32.totalorder %s18, 3
      %p215 = pnand %p213, %p214
      %p216 = pneg %p215
      // Predicated region
      $region25: #{tpu_custom_call.1} parent=5 // pred_check
        _
      $region26: #{tpu_custom_call.1} parent=5 // pred_check_branch
        %218 = sbr.rel (%p215) target = $region28
      $region27: #{tpu_custom_call.1} parent=5 // pred_region
        %s219 = ssub.s32 %s18, 1
        %s220 = sand.u32 %s51, 1
        %s221 = scalar_lea.sflag [#allocation5], %s220
        %s222 = sand.u32 %s51, 1
        %s223 = smul.addr %s222, 8
        %s224 = scalar_lea.vmem [#allocation4], %s223
        // Predicated region
        $region29: #{tpu_custom_call.1} parent=27 // pred_check
          %p225 = pneg %p64
        $region30: #{tpu_custom_call.1} parent=27 // pred_check_branch
          %227 = sbr.rel (%p225) target = $region32
        $region31: #{tpu_custom_call.1} parent=27 // pred_region
          %228 = dma.done %s221, 128
        $region32: #{tpu_custom_call.1} parent=27 // pred_fallthru
          _
        %s229 = sand.u32 %s85, 1
        %s230 = scalar_lea.sflag [#allocation8], %s229
        %s231 = sand.u32 %s85, 1
        %s232 = smul.addr %s231, 8
        %s233 = scalar_lea.vmem [#allocation7], %s232
        // Predicated region
        $region33: #{tpu_custom_call.1} parent=27 // pred_check
          %p234 = pneg %p98
        $region34: #{tpu_custom_call.1} parent=27 // pred_check_branch
          %236 = sbr.rel (%p234) target = $region36
        $region35: #{tpu_custom_call.1} parent=27 // pred_region
          %237 = dma.done %s230, 128
        $region36: #{tpu_custom_call.1} parent=27 // pred_fallthru
          _
        %s238 = sand.u32 %s51, 1
        %s239 = scalar_lea.sflag [#allocation5], %s238
        %s240 = sand.u32 %s51, 1
        %s241 = smul.addr %s240, 8
        %s242 = scalar_lea.vmem [#allocation4], %s241
        %p243 = pneg %p64
        %p244 = pneg %p61
        %s245 = sand.u32 %s85, 1
        %s246 = scalar_lea.sflag [#allocation8], %s245
        %s247 = sand.u32 %s85, 1
        %s248 = smul.addr %s247, 8
        %s249 = scalar_lea.vmem [#allocation7], %s248
        %p250 = pneg %p98
        %p251 = pneg %p95
        %p252 = pneg %p124
        %p253 = pneg %p121
        %p254 = pneg %p150
        %p255 = pneg %p147
        %s256 = smul.u32 %s27, 2
        %s257 = sadd.s32 %s256, %s28
        %p258 = scmp.lt.s32.totalorder %s257, 1
        %s259 = scalar_select %p258, %s257, 1
        %s260 = smul.u32 %s27, 2
        %s261 = sadd.s32 %s260, %s28
        %p262 = scmp.lt.s32.totalorder %s261, 1
        %s263 = scalar_select %p262, %s261, 1
        %p264 = scmp.eq.s32.totalorder %s28, 0
        // Predicated region
        $region37: #{tpu_custom_call.1} parent=27 // pred_check
          %p265 = pneg %p264
        $region38: #{tpu_custom_call.1} parent=27 // pred_check_branch
          %267 = sbr.rel (%p265) target = $region40
        $region39: #{tpu_custom_call.1} parent=27 // pred_region
          %268 = vst [vmem:[#allocation2] sm:$0xff] 0.0
          %269 = vst [vmem:[#allocation3] sm:$0xff] 0.0
        $region40: #{tpu_custom_call.1} parent=27 // pred_fallthru
          _
        %v270 = vld [vmem:[%s224] sm:$0xff]
        %v271 = vld [vmem:[%s233] sm:$0xff]
        %vm272 = vweird.f32 %v270
        %vm273 = vmxor %vm272, 1
        %vm274 = vweird.f32 %v271
        %vm275 = vmxor %vm274, 1
        %vm276 = vmand %vm273, %vm275
        %v277 = vsub.f32 %v271, %v270
        %v278 = vand.u32 2147483647, %v277
        %vm279 = vcmp.lt.f32.partialorder %v278, 1.0
        %v280 = vmul.f32 %v277, %v277
        %v281 = vmul.f32 %v278, 2.0
        %v282 = vsub.f32 %v281, 1.0
        %v283 = vsel %vm279, %v280, %v282
        %v284 = vsel %vm276, %v283, 0.0
        %v285 = vsel %vm276, 1.0, 0.0
        %v286 = vld [vmem:[#allocation2] sm:$0xff]
        %v287 = vadd.f32 %v284, 0.0
        %v288 = vadd.f32 %v286, %v287
        %289 = vst [vmem:[#allocation2] sm:$0xff] %v288
        %v290 = vld [vmem:[#allocation3] sm:$0xff]
        %v291 = vadd.f32 %v285, 0.0
        %v292 = vadd.f32 %v290, %v291
        %293 = vst [vmem:[#allocation3] sm:$0xff] %v292
        %p294 = scmp.eq.s32.totalorder %s28, 1
        // Predicated region
        $region41: #{tpu_custom_call.1} parent=27 // pred_check
          %p295 = pneg %p294
        $region42: #{tpu_custom_call.1} parent=27 // pred_check_branch
          %297 = sbr.rel (%p295) target = $region44
        $region43: #{tpu_custom_call.1} parent=27 // pred_region
          %v298 = vld [vmem:[#allocation2] sm:$0xff]
          %v299 = vrot.slane %v298, 4
          %v300 = vadd.f32 %v298, %v299
          %v301 = vrot.slane %v300, 2
          %v302 = vadd.f32 %v300, %v301
          %v303 = vrot.slane %v302, 1
          %v304 = vadd.f32 %v302, %v303
          %305 = vst [vmem:[#allocation9] sm:$0x1] %v304
          %v306 = vld [vmem:[#allocation3] sm:$0xff]
          %v307 = vrot.slane %v306, 4
          %v308 = vadd.f32 %v306, %v307
          %v309 = vrot.slane %v308, 2
          %v310 = vadd.f32 %v308, %v309
          %v311 = vrot.slane %v310, 1
          %v312 = vadd.f32 %v310, %v311
          %313 = vst [vmem:[#allocation10] sm:$0x1] %v312
        $region44: #{tpu_custom_call.1} parent=27 // pred_fallthru
          _
        // Predicated region
        $region45: #{tpu_custom_call.1} parent=27 // pred_check
          %p314 = pneg %p121
        $region46: #{tpu_custom_call.1} parent=27 // pred_check_branch
          %316 = sbr.rel (%p314) target = $region48
        $region47: #{tpu_custom_call.1} parent=27 // pred_region
          %s318 = ssub.s32 16, 16
          %319 = vsyncadd [#allocation6], %s318
          %s320 = smul.addr %s27, 16
          %s321 = scalar_lea.hbm %s2, %s320
          %s323 = sshll.u32 [#allocation9], 4
          %s324 = int_to_ptr.vmem [resolvable:$true] %s323
          %326 = dma.vmem_to_hbm [thread:$0]  %s324, 16, %s321, [#allocation6]
        $region48: #{tpu_custom_call.1} parent=27 // pred_fallthru
          _
        // Predicated region
        $region49: #{tpu_custom_call.1} parent=27 // pred_check
          %p327 = pneg %p147
        $region50: #{tpu_custom_call.1} parent=27 // pred_check_branch
          %329 = sbr.rel (%p327) target = $region52
        $region51: #{tpu_custom_call.1} parent=27 // pred_region
          %s331 = ssub.s32 16, 16
          %332 = vsyncadd [#allocation11], %s331
          %s333 = smul.addr %s27, 16
          %s334 = scalar_lea.hbm %s3, %s333
          %s336 = sshll.u32 [#allocation10], 4
          %s337 = int_to_ptr.vmem [resolvable:$true] %s336
          %339 = dma.vmem_to_hbm [thread:$0]  %s337, 16, %s334, [#allocation11]
        $region52: #{tpu_custom_call.1} parent=27 // pred_fallthru
          _
        // Predicated region
        $region53: #{tpu_custom_call.1} parent=27 // pred_check
          %p340 = pneg %p121
        $region54: #{tpu_custom_call.1} parent=27 // pred_check_branch
          %342 = sbr.rel (%p340) target = $region56
        $region55: #{tpu_custom_call.1} parent=27 // pred_region
          %343 = dma.done [#allocation6], 16
        $region56: #{tpu_custom_call.1} parent=27 // pred_fallthru
          _
        // Predicated region
        $region57: #{tpu_custom_call.1} parent=27 // pred_check
          %p344 = pneg %p147
        $region58: #{tpu_custom_call.1} parent=27 // pred_check_branch
          %346 = sbr.rel (%p344) target = $region60
        $region59: #{tpu_custom_call.1} parent=27 // pred_region
          %347 = dma.done [#allocation11], 16
        $region60: #{tpu_custom_call.1} parent=27 // pred_fallthru
          _
      $region28: #{tpu_custom_call.1} parent=5 // pred_fallthru
        _
      %p348 = scmp.le.s32.totalorder 2, %s18
      // Predicated region
      $region61: #{tpu_custom_call.1} parent=5 // pred_check
        %p349 = pneg %p348
      $region62: #{tpu_custom_call.1} parent=5 // pred_check_branch
        %351 = sbr.rel (%p349) target = $region64
      $region63: #{tpu_custom_call.1} parent=5 // pred_region
        %s352 = ssub.s32 %s18, 2
      $region64: #{tpu_custom_call.1} parent=5 // pred_fallthru
        _
    $region6: #{tpu_custom_call.1} parent=1 // loop_footer
      %s22 = sadd.s32 1, %s18
    $region7: #{tpu_custom_call.1} parent=1 // loop_footer_branch
      %17 = sbr.rel target = $region3
    $region8: #{tpu_custom_call.1} parent=1 // loop_exit
      _
    %353 = vsyncpa [#allocation5], 1
    %s354 = scalar_lea.sflag [#allocation5], 1
    %355 = vsyncpa %s354, 1
    %356 = vsyncpa [#allocation8], 1
    %s357 = scalar_lea.sflag [#allocation8], 1
    %358 = vsyncpa %s357, 1
    %359 = vsyncpa [#allocation6], 1
    %s360 = scalar_lea.sflag [#allocation6], 1
    %361 = vsyncpa %s360, 1
    %362 = vsyncpa [#allocation11], 1

</llo_original>
